<compile_context>
chip_gen: v7x
topology: tpu7x:2x2x1
jax: 0.10.0
libtpu: 0.0.40
codegen_flags: <defaults>
</compile_context>

<pallas_src>
import functools

import jax
import jax.numpy as jnp
from jax.experimental import pallas as pl
from jax.experimental.pallas import tpu as pltpu


def _round_up(x, m):
    return ((x + m - 1) // m) * m


def _vmem_budgets():
    """Per-generation (logits_block_bytes, vmem_limit_bytes)."""
    kind = ""
    try:
        kind = jax.devices()[0].device_kind.lower()
    except Exception:
        pass
    if "v7" in kind or "7x" in kind:
        # 64 MiB physical VMEM per TC: big blocks, explicit headroom for the
        # double-buffered input plus (C,T) elementwise temporaries.
        return 8 << 20, 48 << 20
    if "v6" in kind:
        # 128 MiB physical, 32 MiB scoped default -> raise it.
        return 8 << 20, 96 << 20
    if "v5" in kind:
        # v5e: 16 MiB scoped default; moderate blocks, raised limit.
        return 4 << 20, 32 << 20
    return 4 << 20, 32 << 20


def _pick_tile_hw(C, HW, itemsize, logits_block_bytes, max_tile=65536):
    """Largest 128-multiple pixel tile whose (C_pad, T) logits block stays
    under the per-chip byte budget (dtype-aware)."""
    c_pad = _round_up(max(C, 1), 8)                       # sublane padding
    cap = (logits_block_bytes // (c_pad * itemsize)) // 128 * 128
    cap = max(128, min(cap, max_tile))
    return min(cap, _round_up(HW, 128))


def _ce_kernel(logits_ref, tgt_ref, acc_ref, *, ignore_index, hw_total,
               tiles_per_core):
    """One grid step: one (C, T) pixel slab for one (core-split, batch) pair.

    Grid = (core_split, B, tiles_per_core). The last axis is the 'arbitrary'
    reduction axis; lane-wise partial sums accumulate into the VMEM-resident
    per-(core, batch) output block acc_ref (1, 1, 2, T):
      row 0 = sum of per-pixel NLL, row 1 = valid-pixel count.
    """
    c = pl.program_id(0)
    j = pl.program_id(2)

    @pl.when(j == 0)
    def _init():
        acc_ref[...] = jnp.zeros_like(acc_ref)

    x = logits_ref[0].astype(jnp.float32)         # (C, T): classes on sublanes
    t = tgt_ref[0].astype(jnp.int32)              # (1, T): widen narrow labels
    C, T = x.shape

    tile_idx = c * tiles_per_core + j             # global pixel-tile index

    def accumulate(valid):
        # Numerically stable per-pixel log-sum-exp over the class axis.
        m = jnp.max(x, axis=0, keepdims=True)                               # (1,T)
        lse = jnp.log(jnp.sum(jnp.exp(x - m), axis=0, keepdims=True)) + m   # (1,T)
        # Gather the target-class logit with a fused select-reduce.
        cls = jax.lax.broadcasted_iota(jnp.int32, (C, T), 0)
        tgt_logit = jnp.sum(jnp.where(cls == t, x, 0.0), axis=0, keepdims=True)
        # Select (not multiply) so inf/NaN garbage in masked lanes cannot leak.
        nll = jnp.where(valid, lse - tgt_logit, 0.0)
        acc_ref[0, 0, 0:1, :] = acc_ref[0, 0, 0:1, :] + nll
        acc_ref[0, 0, 1:2, :] = acc_ref[0, 0, 1:2, :] + valid.astype(jnp.float32)

    interior = (tile_idx + 1) * T <= hw_total

    @pl.when(interior)
    def _fast():                                   # hot path: no ragged mask
        accumulate(t != ignore_index)

    @pl.when(jnp.logical_not(interior))
    def _edge():                                   # ragged / phantom tiles
        lane = jax.lax.broadcasted_iota(jnp.int32, (1, T), 1)
        in_bounds = (tile_idx * T + lane) < hw_total
        accumulate(jnp.logical_and(t != ignore_index, in_bounds))


def sem_seg_ce_loss(logits_nchw, masks_bhw, *, ignore_index=255, tile_hw=None,
                    core_split=None):
    """Cross-entropy over pixels with ignore_index, reduction='mean'.

    logits_nchw: (B, C, H, W) float (f32 or bf16)
    masks_bhw:   (B, H, W) integer labels (any int dtype; passed through)
    Returns scalar float32 (F.cross_entropy(..., 'mean'), except 0.0 instead
    of NaN when all pixels are ignored).
    """
    B, C, H, W = logits_nchw.shape
    HW = H * W

    logits_block_bytes, vmem_limit = _vmem_budgets()
    itemsize = jnp.dtype(logits_nchw.dtype).itemsize
    if tile_hw is None:
        tile_hw = _pick_tile_hw(C, HW, itemsize, logits_block_bytes)

    # NCHW consumed directly: merging H,W is a free reshape (no transpose/pad).
    logits = logits_nchw.reshape(B, C, HW)
    masks = masks_bhw
    if jnp.dtype(masks.dtype).itemsize > 4:       # Pallas wants <=32-bit ints
        masks = masks.astype(jnp.int32)
    targets = masks.reshape(B, 1, HW)             # narrow dtype passes through

    num_tiles = pl.cdiv(HW, tile_hw)
    if core_split is None:
        core_split = 2 if num_tiles > 1 else 1
    ntpc = pl.cdiv(num_tiles, core_split)         # HW tiles per core-split

    kernel = functools.partial(_ce_kernel, ignore_index=ignore_index,
                               hw_total=HW, tiles_per_core=ntpc)

    def _tile_map(c, b, j):
        # Clamp phantom tiles (odd split) to the last real block; the kernel
        # masks them out via the unclamped global tile index.
        return (b, 0, jnp.minimum(c * ntpc + j, num_tiles - 1))

    acc = pl.pallas_call(
        kernel,
        out_shape=jax.ShapeDtypeStruct((core_split, B, 2, tile_hw), jnp.float32),
        grid_spec=pltpu.PrefetchScalarGridSpec(
            num_scalar_prefetch=0,
            grid=(core_split, B, ntpc),
            in_specs=[
                pl.BlockSpec((1, C, tile_hw), _tile_map),
                pl.BlockSpec((1, 1, tile_hw), _tile_map),
            ],
            out_specs=pl.BlockSpec((1, 1, 2, tile_hw),
                                   lambda c, b, j: (c, b, 0, 0)),
        ),
        compiler_params=pltpu.CompilerParams(
            # core-split and batch axes parallel (v7x megacore); HW-tile axis
            # is the resident-output reduction.
            dimension_semantics=("parallel", "parallel", "arbitrary"),
            vmem_limit_bytes=vmem_limit),
    )(logits, targets)

    totals = jnp.sum(acc, axis=(0, 1, 3))         # (2,): [loss_sum, count]
    s, cnt = totals[0], totals[1]
    # F.cross_entropy returns NaN when every pixel is ignored; guard with 0.0.
    return jnp.where(cnt > 0, s / cnt, jnp.float32(0.0))


class PixelCriterionPallas:
    """JAX/Pallas port of PixelCriterion (sem_seg_ce only)."""

    def __init__(self, weight_dict, losses, ignore_index=255):
        self.weight_dict = weight_dict
        self.losses = losses
        self.ignore_index = ignore_index

    def loss_sem_seg_ce(self, outputs, targets):
        if 'sem_seg_logits' not in outputs:
            return {'loss_sem_seg_ce': jnp.float32(0.0)}
        if 'masks' not in targets or targets['masks'] is None:
            return {'loss_sem_seg_ce': jnp.float32(0.0)}
        logits = outputs['sem_seg_logits']
        gt = targets['masks']
        if gt.ndim == 4 and gt.shape[1] == 1:       # squeeze(1) equivalent
            gt = gt[:, 0]
        if logits.shape[0] != gt.shape[0]:          # batch mismatch -> 0 loss
            return {'loss_sem_seg_ce': jnp.float32(0.0)}
        if logits.shape[-2:] != gt.shape[-2:]:
            # F.interpolate(mode='nearest') on integer labels == index gather:
            # src = floor(dst * in_size / out_size).
            Hs, Ws = gt.shape[-2:]
            Ht, Wt = logits.shape[-2:]
            ri = (jnp.arange(Ht) * Hs) // Ht
            ci = (jnp.arange(Wt) * Ws) // Wt
            gt = gt[:, ri][:, :, ci]
        loss = sem_seg_ce_loss(logits, gt, ignore_index=self.ignore_index)
        return {'loss_sem_seg_ce': loss}

    def __call__(self, outputs, targets):
        losses = {}
        for loss_type in self.losses:
            method = getattr(self, f'loss_{loss_type}', None)
            if method is not None:
                losses.update(method(outputs, targets))
        return {k: v * self.weight_dict.get(k, 1.0) for k, v in losses.items()}


if __name__ == "__main__":
    def reference(logits, masks, ignore_index=255):
        B, C = logits.shape[0], logits.shape[1]
        lf = jnp.transpose(logits.astype(jnp.float32), (0, 2, 3, 1)).reshape(-1, C)
        tf = masks.astype(jnp.int32).reshape(-1)
        valid = tf != ignore_index
        logp = jax.nn.log_softmax(lf, axis=-1)
        nll = -jnp.take_along_axis(
            logp, jnp.where(valid, tf, 0)[:, None], axis=-1)[:, 0]
        return jnp.sum(jnp.where(valid, nll, 0.0)) / jnp.sum(
            valid.astype(jnp.float32))

    key = jax.random.PRNGKey(0)

    # --- Test 1: module-level shapes, f32 logits, int32 masks, auto tile. ---
    B, C, H, W = 2, 4, 16, 16
    k1, k2, k3 = jax.random.split(key, 3)
    logits = jax.random.normal(k1, (B, C, H, W), dtype=jnp.float32)
    masks = jax.random.randint(k2, (B, H, W), 0, C, dtype=jnp.int32)
    ignore_mask = jax.random.bernoulli(k3, 0.1, (B, H, W))
    masks = jnp.where(ignore_mask, jnp.int32(255), masks)

    criterion = PixelCriterionPallas(
        weight_dict={'loss_sem_seg_ce': 1.0},
        losses=['sem_seg_ce'],
        ignore_index=255,
    )
    out = criterion({'sem_seg_logits': logits}, {'masks': masks})
    loss1 = jax.block_until_ready(out['loss_sem_seg_ce'])
    ref1 = reference(logits, masks)
    assert jnp.allclose(loss1, ref1, rtol=1e-5, atol=1e-5), (loss1, ref1)

    # --- Test 2: odd C, ragged HW, bf16 logits, uint8 labels, forced small
    # tile so the core-split / phantom-tile / ragged-edge paths execute. ---
    B2, C2, H2, W2 = 2, 5, 17, 21
    k4, k5, k6 = jax.random.split(jax.random.PRNGKey(1), 3)
    logits2 = jax.random.normal(
        k4, (B2, C2, H2, W2), dtype=jnp.float32).astype(jnp.bfloat16)
    masks2 = jax.random.randint(
        k5, (B2, H2, W2), 0, C2, dtype=jnp.int32).astype(jnp.uint8)
    ignore2 = jax.random.bernoulli(k6, 0.15, (B2, H2, W2))
    masks2 = jnp.where(ignore2, jnp.uint8(255), masks2)

    loss2 = jax.block_until_ready(
        sem_seg_ce_loss(logits2, masks2, ignore_index=255, tile_hw=128))
    ref2 = reference(logits2, masks2)
    assert jnp.allclose(loss2, ref2, rtol=2e-5, atol=2e-5), (loss2, ref2)

    print("KERNEL_OK")
</pallas_src>

<mosaic_0001>
module attributes {stable_mosaic.version = 11 : i64} {
  func.func @_ce_kernel(%arg0: i32, %arg1: i32, %arg2: i32, %arg3: memref<1x4x256xf32, #tpu.memory_space<vmem>>, %arg4: memref<1x1x256xi32, #tpu.memory_space<vmem>>, %arg5: memref<1x1x2x256xf32, #tpu.memory_space<vmem>>) attributes {dimension_semantics = [#tpu.dimension_semantics<parallel>, #tpu.dimension_semantics<parallel>, #tpu.dimension_semantics<arbitrary>], iteration_bounds = array<i64: 1, 2, 1>, scalar_prefetch = 0 : i64, scratch_operands = 0 : i64, tpu.core_type = #tpu.core_type<tc>, window_params = [{transform_indices = @transform_0, window_bounds = array<i64: 1, 4, 256>}, {transform_indices = @transform_1, window_bounds = array<i64: 1, 1, 256>}, {transform_indices = @transform_2, window_bounds = array<i64: 1, 1, 2, 256>}]} {
    %c0_i32 = arith.constant 0 : i32
    %0 = arith.cmpi eq, %arg2, %c0_i32 : i32
    %1 = arith.extui %0 : i1 to i32
    %c0_i32_0 = arith.constant 0 : i32
    %2 = arith.cmpi ne, %1, %c0_i32_0 : i32
    scf.if %2 {
      %cst = arith.constant 0.000000e+00 : f32
      %17 = vector.broadcast %cst : f32 to vector<1x1x2x256xf32>
      %c0_10 = arith.constant 0 : index
      %c0_11 = arith.constant 0 : index
      %c0_12 = arith.constant 0 : index
      %c0_13 = arith.constant 0 : index
      %18 = vector.load %arg5[%c0_10, %c0_11, %c0_12, %c0_13] : memref<1x1x2x256xf32, #tpu.memory_space<vmem>>, vector<1x1x2x256xf32>
      tpu.vector_store %arg5[%c0_10, %c0_11, %c0_12, %c0_13], %17 {strides = array<i32>} : memref<1x1x2x256xf32, #tpu.memory_space<vmem>>, vector<1x1x2x256xf32>,
    } else {
    }
    %c0 = arith.constant 0 : index
    %c0_1 = arith.constant 0 : index
    %c0_2 = arith.constant 0 : index
    %3 = vector.load %arg3[%c0, %c0_1, %c0_2] : memref<1x4x256xf32, #tpu.memory_space<vmem>>, vector<1x4x256xf32>
    %4 = vector.shape_cast %3 : vector<1x4x256xf32> to vector<4x256xf32>
    %c0_3 = arith.constant 0 : index
    %c0_4 = arith.constant 0 : index
    %c0_5 = arith.constant 0 : index
    %5 = vector.load %arg4[%c0_3, %c0_4, %c0_5] : memref<1x1x256xi32, #tpu.memory_space<vmem>>, vector<1x1x256xi32>
    %6 = vector.shape_cast %5 : vector<1x1x256xi32> to vector<1x256xi32>
    %c1_i32 = arith.constant 1 : i32
    %7 = arith.muli %arg0, %c1_i32 : i32
    %8 = arith.addi %7, %arg2 : i32
    %c1_i32_6 = arith.constant 1 : i32
    %9 = arith.addi %8, %c1_i32_6 : i32
    %c256_i32 = arith.constant 256 : i32
    %10 = arith.muli %9, %c256_i32 : i32
    %c256_i32_7 = arith.constant 256 : i32
    %11 = arith.cmpi sle, %10, %c256_i32_7 : i32
    %12 = arith.extui %11 : i1 to i32
    %c0_i32_8 = arith.constant 0 : i32
    %13 = arith.cmpi ne, %12, %c0_i32_8 : i32
    scf.if %13 {
      %c255_i32 = arith.constant 255 : i32
      %17 = vector.broadcast %c255_i32 : i32 to vector<1x256xi32>
      %18 = arith.cmpi ne, %6, %17 : vector<1x256xi32>
      %cst = arith.constant dense<0xFF800000> : vector<256xf32>
      %19 = vector.multi_reduction <maximumf>, %4, %cst [0] : vector<4x256xf32> to vector<256xf32>
      %20 = vector.shape_cast %19 : vector<256xf32> to vector<1x256xf32>
      %21 = vector.broadcast %20 : vector<1x256xf32> to vector<4x256xf32>
      %22 = arith.subf %4, %21 : vector<4x256xf32>
      %23 = math.exp %22 : vector<4x256xf32>
      %cst_10 = arith.constant dense<0.000000e+00> : vector<256xf32>
      %24 = vector.multi_reduction <add>, %23, %cst_10 [0] : vector<4x256xf32> to vector<256xf32>
      %25 = vector.shape_cast %24 : vector<256xf32> to vector<1x256xf32>
      %26 = math.log %25 : vector<1x256xf32>
      %27 = arith.addf %26, %20 : vector<1x256xf32>
      %28 = tpu.iota {dimensions = array<i32: 0>} : vector<4x256xi32>
      %29 = vector.broadcast %6 : vector<1x256xi32> to vector<4x256xi32>
      %30 = arith.cmpi eq, %28, %29 : vector<4x256xi32>
      %cst_11 = arith.constant 0.000000e+00 : f32
      %31 = vector.broadcast %cst_11 : f32 to vector<4x256xf32>
      %32 = arith.select %30, %4, %31 : vector<4x256xi1>, vector<4x256xf32>
      %cst_12 = arith.constant dense<0.000000e+00> : vector<256xf32>
      %33 = vector.multi_reduction <add>, %32, %cst_12 [0] : vector<4x256xf32> to vector<256xf32>
      %34 = vector.shape_cast %33 : vector<256xf32> to vector<1x256xf32>
      %35 = arith.subf %27, %34 : vector<1x256xf32>
      %cst_13 = arith.constant 0.000000e+00 : f32
      %36 = vector.broadcast %cst_13 : f32 to vector<1x256xf32>
      %37 = arith.select %18, %35, %36 : vector<1x256xi1>, vector<1x256xf32>
      %c0_14 = arith.constant 0 : index
      %c0_15 = arith.constant 0 : index
      %c0_16 = arith.constant 0 : index
      %c0_17 = arith.constant 0 : index
      %38 = vector.load %arg5[%c0_14, %c0_15, %c0_16, %c0_17] : memref<1x1x2x256xf32, #tpu.memory_space<vmem>>, vector<1x1x1x256xf32>
      %39 = vector.shape_cast %38 : vector<1x1x1x256xf32> to vector<1x256xf32>
      %40 = arith.addf %39, %37 : vector<1x256xf32>
      %c0_18 = arith.constant 0 : index
      %c0_19 = arith.constant 0 : index
      %c0_20 = arith.constant 0 : index
      %c0_21 = arith.constant 0 : index
      %41 = vector.load %arg5[%c0_18, %c0_19, %c0_20, %c0_21] : memref<1x1x2x256xf32, #tpu.memory_space<vmem>>, vector<1x1x1x256xf32>
      %42 = vector.shape_cast %41 : vector<1x1x1x256xf32> to vector<1x256xf32>
      %43 = vector.shape_cast %40 : vector<1x256xf32> to vector<1x1x1x256xf32>
      tpu.vector_store %arg5[%c0_18, %c0_19, %c0_20, %c0_21], %43 {strides = array<i32>} : memref<1x1x2x256xf32, #tpu.memory_space<vmem>>, vector<1x1x1x256xf32>,
      %c0_22 = arith.constant 0 : index
      %c0_23 = arith.constant 0 : index
      %c1 = arith.constant 1 : index
      %c0_24 = arith.constant 0 : index
      %44 = vector.load %arg5[%c0_22, %c0_23, %c1, %c0_24] : memref<1x1x2x256xf32, #tpu.memory_space<vmem>>, vector<1x1x1x256xf32>
      %45 = vector.shape_cast %44 : vector<1x1x1x256xf32> to vector<1x256xf32>
      %46 = arith.extui %18 : vector<1x256xi1> to vector<1x256xi32>
      %47 = arith.sitofp %46 : vector<1x256xi32> to vector<1x256xf32>
      %48 = arith.addf %45, %47 : vector<1x256xf32>
      %c0_25 = arith.constant 0 : index
      %c0_26 = arith.constant 0 : index
      %c1_27 = arith.constant 1 : index
      %c0_28 = arith.constant 0 : index
      %49 = vector.load %arg5[%c0_25, %c0_26, %c1_27, %c0_28] : memref<1x1x2x256xf32, #tpu.memory_space<vmem>>, vector<1x1x1x256xf32>
      %50 = vector.shape_cast %49 : vector<1x1x1x256xf32> to vector<1x256xf32>
      %51 = vector.shape_cast %48 : vector<1x256xf32> to vector<1x1x1x256xf32>
      tpu.vector_store %arg5[%c0_25, %c0_26, %c1_27, %c0_28], %51 {strides = array<i32>} : memref<1x1x2x256xf32, #tpu.memory_space<vmem>>, vector<1x1x1x256xf32>,
    } else {
    }
    %true = arith.constant true
    %14 = arith.xori %11, %true : i1
    %15 = arith.extui %14 : i1 to i32
    %c0_i32_9 = arith.constant 0 : i32
    %16 = arith.cmpi ne, %15, %c0_i32_9 : i32
    scf.if %16 {
      %17 = tpu.iota {dimensions = array<i32: 1>} : vector<1x256xi32>
      %c256_i32_10 = arith.constant 256 : i32
      %18 = arith.muli %8, %c256_i32_10 : i32
      %19 = vector.broadcast %18 : i32 to vector<1x256xi32>
      %20 = arith.addi %19, %17 : vector<1x256xi32>
      %c256_i32_11 = arith.constant 256 : i32
      %21 = vector.broadcast %c256_i32_11 : i32 to vector<1x256xi32>
      %22 = arith.cmpi slt, %20, %21 : vector<1x256xi32>
      %c255_i32 = arith.constant 255 : i32
      %23 = vector.broadcast %c255_i32 : i32 to vector<1x256xi32>
      %24 = arith.cmpi ne, %6, %23 : vector<1x256xi32>
      %25 = arith.andi %24, %22 : vector<1x256xi1>
      %cst = arith.constant dense<0xFF800000> : vector<256xf32>
      %26 = vector.multi_reduction <maximumf>, %4, %cst [0] : vector<4x256xf32> to vector<256xf32>
      %27 = vector.shape_cast %26 : vector<256xf32> to vector<1x256xf32>
      %28 = vector.broadcast %27 : vector<1x256xf32> to vector<4x256xf32>
      %29 = arith.subf %4, %28 : vector<4x256xf32>
      %30 = math.exp %29 : vector<4x256xf32>
      %cst_12 = arith.constant dense<0.000000e+00> : vector<256xf32>
      %31 = vector.multi_reduction <add>, %30, %cst_12 [0] : vector<4x256xf32> to vector<256xf32>
      %32 = vector.shape_cast %31 : vector<256xf32> to vector<1x256xf32>
      %33 = math.log %32 : vector<1x256xf32>
      %34 = arith.addf %33, %27 : vector<1x256xf32>
      %35 = tpu.iota {dimensions = array<i32: 0>} : vector<4x256xi32>
      %36 = vector.broadcast %6 : vector<1x256xi32> to vector<4x256xi32>
      %37 = arith.cmpi eq, %35, %36 : vector<4x256xi32>
      %cst_13 = arith.constant 0.000000e+00 : f32
      %38 = vector.broadcast %cst_13 : f32 to vector<4x256xf32>
      %39 = arith.select %37, %4, %38 : vector<4x256xi1>, vector<4x256xf32>
      %cst_14 = arith.constant dense<0.000000e+00> : vector<256xf32>
      %40 = vector.multi_reduction <add>, %39, %cst_14 [0] : vector<4x256xf32> to vector<256xf32>
      %41 = vector.shape_cast %40 : vector<256xf32> to vector<1x256xf32>
      %42 = arith.subf %34, %41 : vector<1x256xf32>
      %cst_15 = arith.constant 0.000000e+00 : f32
      %43 = vector.broadcast %cst_15 : f32 to vector<1x256xf32>
      %44 = arith.select %25, %42, %43 : vector<1x256xi1>, vector<1x256xf32>
      %c0_16 = arith.constant 0 : index
      %c0_17 = arith.constant 0 : index
      %c0_18 = arith.constant 0 : index
      %c0_19 = arith.constant 0 : index
      %45 = vector.load %arg5[%c0_16, %c0_17, %c0_18, %c0_19] : memref<1x1x2x256xf32, #tpu.memory_space<vmem>>, vector<1x1x1x256xf32>
      %46 = vector.shape_cast %45 : vector<1x1x1x256xf32> to vector<1x256xf32>
      %47 = arith.addf %46, %44 : vector<1x256xf32>
      %c0_20 = arith.constant 0 : index
      %c0_21 = arith.constant 0 : index
      %c0_22 = arith.constant 0 : index
      %c0_23 = arith.constant 0 : index
      %48 = vector.load %arg5[%c0_20, %c0_21, %c0_22, %c0_23] : memref<1x1x2x256xf32, #tpu.memory_space<vmem>>, vector<1x1x1x256xf32>
      %49 = vector.shape_cast %48 : vector<1x1x1x256xf32> to vector<1x256xf32>
      %50 = vector.shape_cast %47 : vector<1x256xf32> to vector<1x1x1x256xf32>
      tpu.vector_store %arg5[%c0_20, %c0_21, %c0_22, %c0_23], %50 {strides = array<i32>} : memref<1x1x2x256xf32, #tpu.memory_space<vmem>>, vector<1x1x1x256xf32>,
      %c0_24 = arith.constant 0 : index
      %c0_25 = arith.constant 0 : index
      %c1 = arith.constant 1 : index
      %c0_26 = arith.constant 0 : index
      %51 = vector.load %arg5[%c0_24, %c0_25, %c1, %c0_26] : memref<1x1x2x256xf32, #tpu.memory_space<vmem>>, vector<1x1x1x256xf32>
      %52 = vector.shape_cast %51 : vector<1x1x1x256xf32> to vector<1x256xf32>
      %53 = arith.extui %25 : vector<1x256xi1> to vector<1x256xi32>
      %54 = arith.sitofp %53 : vector<1x256xi32> to vector<1x256xf32>
      %55 = arith.addf %52, %54 : vector<1x256xf32>
      %c0_27 = arith.constant 0 : index
      %c0_28 = arith.constant 0 : index
      %c1_29 = arith.constant 1 : index
      %c0_30 = arith.constant 0 : index
      %56 = vector.load %arg5[%c0_27, %c0_28, %c1_29, %c0_30] : memref<1x1x2x256xf32, #tpu.memory_space<vmem>>, vector<1x1x1x256xf32>
      %57 = vector.shape_cast %56 : vector<1x1x1x256xf32> to vector<1x256xf32>
      %58 = vector.shape_cast %55 : vector<1x256xf32> to vector<1x1x1x256xf32>
      tpu.vector_store %arg5[%c0_27, %c0_28, %c1_29, %c0_30], %58 {strides = array<i32>} : memref<1x1x2x256xf32, #tpu.memory_space<vmem>>, vector<1x1x1x256xf32>,
    } else {
    }
    return
  }
  func.func @transform_0(%arg0: i32, %arg1: i32, %arg2: i32) -> (i32, i32, i32) {
    %c1_i32 = arith.constant 1 : i32
    %0 = arith.muli %arg0, %c1_i32 : i32
    %1 = arith.addi %0, %arg2 : i32
    %c0_i32 = arith.constant 0 : i32
    %2 = arith.minsi %1, %c0_i32 : i32
    %c0_i32_0 = arith.constant 0 : i32
    %c0_i32_1 = arith.constant 0 : i32
    return %arg1, %c0_i32_0, %2 : i32, i32, i32
  }
  func.func @transform_1(%arg0: i32, %arg1: i32, %arg2: i32) -> (i32, i32, i32) {
    %c1_i32 = arith.constant 1 : i32
    %0 = arith.muli %arg0, %c1_i32 : i32
    %1 = arith.addi %0, %arg2 : i32
    %c0_i32 = arith.constant 0 : i32
    %2 = arith.minsi %1, %c0_i32 : i32
    %c0_i32_0 = arith.constant 0 : i32
    %c0_i32_1 = arith.constant 0 : i32
    return %arg1, %c0_i32_0, %2 : i32, i32, i32
  }
  func.func @transform_2(%arg0: i32, %arg1: i32, %arg2: i32) -> (i32, i32, i32, i32) {
    %c0_i32 = arith.constant 0 : i32
    %c0_i32_0 = arith.constant 0 : i32
    %c0_i32_1 = arith.constant 0 : i32
    return %arg0, %arg1, %c0_i32, %c0_i32_0 : i32, i32, i32, i32
  }
}

</mosaic_0001>

<llo_original>
// kernel: tpu_custom_call.1
$region0: #{tpu_custom_call.1}
  #allocation0 [shape = 'u32[]', space=smem, size = 0x4, offset = 0x4, fixed_abs, tag = 'smem constant byte address 0x4 - core index']
  #allocation1 [shape = 'u32[144,128]{1,0:T(1,128)}', space=vmem, size = 0x12000, scoped, tag = 'internal scratch']
  %s0 = inlined_call_operand.hbm [shape: f32[2,4,256], index: 0, kind: input, shape index: {}]
  %s1 = inlined_call_operand.hbm [shape: s32[2,1,256], index: 1, kind: input, shape index: {}]
  %s2 = inlined_call_operand.hbm [shape: f32[1,2,2,256], index: 2, kind: output, shape index: {}]
  %s3 = sld [smem:[#allocation0]]
  $region61: #{tpu_custom_call.1} parent=0
    _
  %s5 = ssub.s32 1, %s3
  %s6 = scalar_select 0, %s5, %s3
  $region1: #{tpu_custom_call.1} parent=0
    #allocation2 [shape = 'u8[8192]{0}', space=vmem, size = 0x2000, scoped, tag = 'input window, operand 0']
    #allocation3 [shape = 's32[2]{0}', space=sflag, size = 0x8, scoped, tag = 'scoped memory for tpu_custom_call.1']
    #allocation4 [shape = 's32[2]{0}', space=sflag, size = 0x8, scoped, tag = 'scoped memory for tpu_custom_call.1']
    #allocation5 [shape = 'u8[2048]{0}', space=vmem, size = 0x800, scoped, tag = 'input window, operand 1']
    #allocation6 [shape = 's32[2]{0}', space=sflag, size = 0x8, scoped, tag = 'scoped memory for tpu_custom_call.1']
    #allocation7 [shape = 'u8[4096]{0}', space=vmem, size = 0x1000, scoped, tag = 'output window, operand 0']
    %7 = vsyncpa [#allocation3], 0
    %s8 = scalar_lea.sflag [#allocation3], 1
    %9 = vsyncpa %s8, 0
    %10 = vsyncpa [#allocation6], 0
    %s11 = scalar_lea.sflag [#allocation6], 1
    %12 = vsyncpa %s11, 0
    %13 = vsyncpa [#allocation4], 0
    %s14 = scalar_lea.sflag [#allocation4], 1
    %15 = vsyncpa %s14, 0
    loop: start=0, step=1, limit=4
    $region2: #{tpu_custom_call.1} parent=1 // loop_pre_header
      _
    $region3: #{tpu_custom_call.1} parent=1 // loop_header
      %s17 = sphi 0, %s21
      %p18 = scmp.ge.s32.totalorder %s17, 4
      %s24 = sphi 0, %s43
      %s25 = sphi 0, %s39
      %s26 = sphi 0, %s35
      %s27 = sphi 0, %s24
      %s28 = sphi 0, %s25
      %s29 = sphi 0, %s26
      %s30 = sphi 0, %s27
      %s31 = sphi 0, %s28
      %s32 = sphi 0, %s29
      %s54 = sphi 0, %s56
      %s57 = sphi 0, %s54
      %s58 = sphi 0, %s57
      %s74 = sphi 0, %s58
      %s88 = sphi 0, %s90
      %s91 = sphi 0, %s88
      %s92 = sphi 0, %s91
      %s108 = sphi 0, %s92
      %s116 = sphi 0, %s118
      %s119 = sphi 0, %s116
      %s120 = sphi 0, %s119
      %s136 = sphi 0, %s120
    $region4: #{tpu_custom_call.1} parent=1 // loop_header_branch
      %20 = sbr.rel (%p18) target = $region8
    $region5: #{tpu_custom_call.1} parent=1 // loop_body
      %s22 = ssub.s32 %s17, 1
      %s23 = ssub.s32 %s17, 2
      %s33 = sadd.s32 1, %s26
      %p34 = scmp.ge.s32.totalorder %s33, 1
      %s35 = scalar_select %p34, 0, %s33
      %s36 = sadd.s32 1, %s25
      %s37 = scalar_select %p34, %s36, %s25
      %p38 = scmp.ge.s32.totalorder %s37, 2
      %s39 = scalar_select %p38, 0, %s37
      %s40 = sadd.s32 1, %s24
      %s41 = scalar_select %p38, %s40, %s24
      %p42 = scmp.ge.s32.totalorder %s41, 1
      %s43 = scalar_select %p42, 0, %s41
      %s44 = sadd.s32 %s24, %s26
      %p45 = scmp.lt.s32.totalorder %s44, 0
      %s46 = scalar_select %p45, %s44, 0
      %s47 = sadd.s32 %s43, %s35
      %p48 = scmp.lt.s32.totalorder %s47, 0
      %s49 = scalar_select %p48, %s47, 0
      %s50 = ssub.s32 %s25, %s39
      %s51 = ssub.s32 %s46, %s49
      %s52 = sor.u32 %s50, %s51
      %p53 = scmp.eq.s32.totalorder %s52, 0
      %s55 = sadd.s32 %s54, 1
      %s56 = scalar_select %p53, %s54, %s55
      %p59 = pneg %p53
      %p60 = scmp.eq.s32.totalorder %s17, 1
      %p61 = por %p59, %p60
      %p62 = scmp.ne.s32.totalorder %s54, %s57
      %p63 = scmp.eq.s32.totalorder %s17, 0
      %p64 = por %p62, %p63
      %p65 = scmp.ne.s32.totalorder %s54, %s57
      %p66 = scmp.eq.s32.totalorder %s22, 1
      %p67 = por %p65, %p66
      %p68 = scmp.ne.s32.totalorder %s57, %s58
      %p69 = scmp.eq.s32.totalorder %s22, 0
      %p70 = por %p68, %p69
      %p71 = scmp.ne.s32.totalorder %s57, %s58
      %p72 = scmp.eq.s32.totalorder %s23, 1
      %p73 = por %p71, %p72
      %p75 = scmp.ne.s32.totalorder %s58, %s74
      %p76 = scmp.eq.s32.totalorder %s23, 0
      %p77 = por %p75, %p76
      %s78 = sadd.s32 %s24, %s26
      %p79 = scmp.lt.s32.totalorder %s78, 0
      %s80 = scalar_select %p79, %s78, 0
      %s81 = sadd.s32 %s43, %s35
      %p82 = scmp.lt.s32.totalorder %s81, 0
      %s83 = scalar_select %p82, %s81, 0
      %s84 = ssub.s32 %s25, %s39
      %s85 = ssub.s32 %s80, %s83
      %s86 = sor.u32 %s84, %s85
      %p87 = scmp.eq.s32.totalorder %s86, 0
      %s89 = sadd.s32 %s88, 1
      %s90 = scalar_select %p87, %s88, %s89
      %p93 = pneg %p87
      %p94 = scmp.eq.s32.totalorder %s17, 1
      %p95 = por %p93, %p94
      %p96 = scmp.ne.s32.totalorder %s88, %s91
      %p97 = scmp.eq.s32.totalorder %s17, 0
      %p98 = por %p96, %p97
      %p99 = scmp.ne.s32.totalorder %s88, %s91
      %p100 = scmp.eq.s32.totalorder %s22, 1
      %p101 = por %p99, %p100
      %p102 = scmp.ne.s32.totalorder %s91, %s92
      %p103 = scmp.eq.s32.totalorder %s22, 0
      %p104 = por %p102, %p103
      %p105 = scmp.ne.s32.totalorder %s91, %s92
      %p106 = scmp.eq.s32.totalorder %s23, 1
      %p107 = por %p105, %p106
      %p109 = scmp.ne.s32.totalorder %s92, %s108
      %p110 = scmp.eq.s32.totalorder %s23, 0
      %p111 = por %p109, %p110
      %s112 = ssub.s32 %s24, %s43
      %s113 = ssub.s32 %s25, %s39
      %s114 = sor.u32 %s112, %s113
      %p115 = scmp.eq.s32.totalorder %s114, 0
      %s117 = sadd.s32 %s116, 1
      %s118 = scalar_select %p115, %s116, %s117
      %p121 = pneg %p115
      %p122 = scmp.eq.s32.totalorder %s17, 1
      %p123 = por %p121, %p122
      %p124 = scmp.ne.s32.totalorder %s116, %s119
      %p125 = scmp.eq.s32.totalorder %s17, 0
      %p126 = por %p124, %p125
      %p127 = scmp.ne.s32.totalorder %s116, %s119
      %p128 = scmp.eq.s32.totalorder %s22, 1
      %p129 = por %p127, %p128
      %p130 = scmp.ne.s32.totalorder %s119, %s120
      %p131 = scmp.eq.s32.totalorder %s22, 0
      %p132 = por %p130, %p131
      %p133 = scmp.ne.s32.totalorder %s119, %s120
      %p134 = scmp.eq.s32.totalorder %s23, 1
      %p135 = por %p133, %p134
      %p137 = scmp.ne.s32.totalorder %s120, %s136
      %p138 = scmp.eq.s32.totalorder %s23, 0
      %p139 = por %p137, %p138
      %p140 = scmp.le.s32.totalorder 1, %s17
      %p141 = scmp.lt.s32.totalorder %s17, 3
      %p142 = pnand %p140, %p141
      %p143 = pneg %p142
      // Predicated region
      $region9: #{tpu_custom_call.1} parent=5 // pred_check
        _
      $region10: #{tpu_custom_call.1} parent=5 // pred_check_branch
        %145 = sbr.rel (%p142) target = $region12
      $region11: #{tpu_custom_call.1} parent=5 // pred_region
        %s146 = ssub.s32 %s17, 1
      $region12: #{tpu_custom_call.1} parent=5 // pred_fallthru
        _
      %p147 = scmp.lt.s32.totalorder %s17, 2
      // Predicated region
      $region13: #{tpu_custom_call.1} parent=5 // pred_check
        %p148 = pneg %p147
      $region14: #{tpu_custom_call.1} parent=5 // pred_check_branch
        %150 = sbr.rel (%p148) target = $region16
      $region15: #{tpu_custom_call.1} parent=5 // pred_region
        // Predicated region
        $region17: #{tpu_custom_call.1} parent=15 // pred_check
          %p151 = pneg %p64
        $region18: #{tpu_custom_call.1} parent=15 // pred_check_branch
          %153 = sbr.rel (%p151) target = $region20
        $region19: #{tpu_custom_call.1} parent=15 // pred_region
          %s154 = sand.u32 %s54, 1
          %s155 = scalar_lea.sflag [#allocation3], %s154
          %s156 = sand.u32 %s54, 1
          %s157 = smul.addr %s156, 8
          %s158 = scalar_lea.vmem [#allocation2], %s157
          %s159 = sadd.s32 %s24, %s26
          %p160 = scmp.lt.s32.totalorder %s159, 0
          %s161 = scalar_select %p160, %s159, 0
          %s162 = smul.u32 2, %s161
          %s164 = ssub.s32 128, 128
          %165 = vsyncadd %s155, %s164
          %s166 = smul.addr %s25, 2
          %s167 = sadd.s32 %s162, %s166
          %s168 = smul.addr %s167, 64
          %s169 = scalar_lea.hbm %s0, %s168
          %s171 = sshll.u32 %s158, 4
          %s172 = int_to_ptr.vmem [resolvable:$true] %s171
          %174 = dma.hbm_to_vmem [thread:$0]  %s169, 128, %s172, %s155
        $region20: #{tpu_custom_call.1} parent=15 // pred_fallthru
          _
        // Predicated region
        $region21: #{tpu_custom_call.1} parent=15 // pred_check
          %p175 = pneg %p98
        $region22: #{tpu_custom_call.1} parent=15 // pred_check_branch
          %177 = sbr.rel (%p175) target = $region24
        $region23: #{tpu_custom_call.1} parent=15 // pred_region
          %s178 = sand.u32 %s88, 1
          %s179 = scalar_lea.sflag [#allocation6], %s178
          %s180 = sand.u32 %s88, 1
          %s181 = smul.addr %s180, 2
          %s182 = scalar_lea.vmem [#allocation5], %s181
          %s183 = sadd.s32 %s24, %s26
          %p184 = scmp.lt.s32.totalorder %s183, 0
          %s185 = scalar_select %p184, %s183, 0
          %s186 = smul.u32 2, %s185
          %s188 = ssub.s32 32, 32
          %189 = vsyncadd %s179, %s188
          %s190 = smul.addr %s25, 2
          %s191 = sadd.s32 %s186, %s190
          %s192 = smul.addr %s191, 16
          %s193 = scalar_lea.hbm %s1, %s192
          %s195 = sshll.u32 %s182, 4
          %s196 = int_to_ptr.vmem [resolvable:$true] %s195
          %198 = dma.hbm_to_vmem [thread:$0]  %s193, 32, %s196, %s179
        $region24: #{tpu_custom_call.1} parent=15 // pred_fallthru
          _
      $region16: #{tpu_custom_call.1} parent=5 // pred_fallthru
        _
      %p199 = scmp.le.s32.totalorder 1, %s17
      %p200 = scmp.lt.s32.totalorder %s17, 3
      %p201 = pnand %p199, %p200
      %p202 = pneg %p201
      // Predicated region
      $region25: #{tpu_custom_call.1} parent=5 // pred_check
        _
      $region26: #{tpu_custom_call.1} parent=5 // pred_check_branch
        %204 = sbr.rel (%p201) target = $region28
      $region27: #{tpu_custom_call.1} parent=5 // pred_region
        %s205 = ssub.s32 %s17, 1
        %s206 = sand.u32 %s57, 1
        %s207 = scalar_lea.sflag [#allocation3], %s206
        %s208 = sand.u32 %s57, 1
        %s209 = smul.addr %s208, 8
        %s210 = scalar_lea.vmem [#allocation2], %s209
        // Predicated region
        $region29: #{tpu_custom_call.1} parent=27 // pred_check
          %p211 = pneg %p70
        $region30: #{tpu_custom_call.1} parent=27 // pred_check_branch
          %213 = sbr.rel (%p211) target = $region32
        $region31: #{tpu_custom_call.1} parent=27 // pred_region
          %214 = dma.done %s207, 128
        $region32: #{tpu_custom_call.1} parent=27 // pred_fallthru
          _
        %s215 = sand.u32 %s91, 1
        %s216 = scalar_lea.sflag [#allocation6], %s215
        %s217 = sand.u32 %s91, 1
        %s218 = smul.addr %s217, 2
        %s219 = scalar_lea.vmem [#allocation5], %s218
        // Predicated region
        $region33: #{tpu_custom_call.1} parent=27 // pred_check
          %p220 = pneg %p104
        $region34: #{tpu_custom_call.1} parent=27 // pred_check_branch
          %222 = sbr.rel (%p220) target = $region36
        $region35: #{tpu_custom_call.1} parent=27 // pred_region
          %223 = dma.done %s216, 32
        $region36: #{tpu_custom_call.1} parent=27 // pred_fallthru
          _
        %s224 = sand.u32 %s57, 1
        %s225 = scalar_lea.sflag [#allocation3], %s224
        %s226 = sand.u32 %s57, 1
        %s227 = smul.addr %s226, 8
        %s228 = scalar_lea.vmem [#allocation2], %s227
        %p229 = pneg %p70
        %p230 = pneg %p67
        %s231 = sand.u32 %s91, 1
        %s232 = scalar_lea.sflag [#allocation6], %s231
        %s233 = sand.u32 %s91, 1
        %s234 = smul.addr %s233, 2
        %s235 = scalar_lea.vmem [#allocation5], %s234
        %p236 = pneg %p104
        %p237 = pneg %p101
        %p238 = pneg %p132
        %p239 = pneg %p129
        %s240 = sand.u32 %s119, 1
        %s241 = scalar_lea.sflag [#allocation4], %s240
        %s242 = sand.u32 %s119, 1
        %s243 = smul.addr %s242, 4
        %s244 = scalar_lea.vmem [#allocation7], %s243
        %s245 = sadd.s32 %s27, %s29
        %p246 = scmp.lt.s32.totalorder %s245, 0
        %s247 = scalar_select %p246, %s245, 0
        %s248 = smul.u32 2, %s247
        %s249 = sadd.s32 %s27, %s29
        %p250 = scmp.lt.s32.totalorder %s249, 0
        %s251 = scalar_select %p250, %s249, 0
        %s252 = smul.u32 2, %s251
        %p253 = scmp.eq.s32.totalorder %s29, 0
        // Predicated region
        $region37: #{tpu_custom_call.1} parent=27 // pred_check
          %p254 = pneg %p253
        $region38: #{tpu_custom_call.1} parent=27 // pred_check_branch
          %256 = sbr.rel (%p254) target = $region40
        $region39: #{tpu_custom_call.1} parent=27 // pred_region
          %257 = vst [vmem:[%s244] sm:$0xf] 0.0
        $region40: #{tpu_custom_call.1} parent=27 // pred_fallthru
          _
        %v258 = vld [vmem:[%s210] sm:$0xff]
        %v259 = vld [vmem:[%s219] sm:$0x3]
        %s260 = sadd.s32 %s27, %s29
        %s261 = sadd.s32 %s260, 1
        %s262 = smul.u32 %s261, 256
        %p263 = scmp.le.s32.totalorder %s262, 256
        // Predicated region
        $region41: #{tpu_custom_call.1} parent=27 // pred_check
          %p264 = pneg %p263
        $region42: #{tpu_custom_call.1} parent=27 // pred_check_branch
          %266 = sbr.rel (%p264) target = $region44
        $region43: #{tpu_custom_call.1} parent=27 // pred_region
          %vm267 = vcmp.ne.s32.totalorder %v259, 255
          %v269 = vcombine.high %v258, %v258
          %vm271 = vcmask 1043456
          %v272 = vsel %vm271, %v258, -inf
          %v273 = vrot.slane %v272, 4
          %v274 = vmax.f32 %v272, %v273
          %v275 = vrot.slane %v274, 2
          %v276 = vmax.f32 %v274, %v275
          %v277 = vrot.slane %v276, 1
          %v278 = vmax.f32 %v276, %v277
          %v279 = vsel %vm271, %v269, -inf
          %v280 = vrot.slane %v279, 4
          %v281 = vmax.f32 %v279, %v280
          %v282 = vrot.slane %v281, 2
          %v283 = vmax.f32 %v281, %v282
          %v284 = vrot.slane %v283, 1
          %v285 = vmax.f32 %v283, %v284
          %v288 = vcombine.low %v278, %v285
          %v290 = vsub.f32 %v258, %v288
          %v291 = vmul.f32 %v290, 1.442695
          %v292 = vpow.pop %v291
          %v294 = vcombine.high %v292, %v292
          %v296 = vsel %vm271, %v292, 0.0
          %v297 = vrot.slane %v296, 4
          %v298 = vadd.f32 %v296, %v297
          %v299 = vrot.slane %v298, 2
          %v300 = vadd.f32 %v298, %v299
          %v301 = vrot.slane %v300, 1
          %v302 = vadd.f32 %v300, %v301
          %v303 = vsel %vm271, %v294, 0.0
          %v304 = vrot.slane %v303, 4
          %v305 = vadd.f32 %v303, %v304
          %v306 = vrot.slane %v305, 2
          %v307 = vadd.f32 %v305, %v306
          %v308 = vrot.slane %v307, 1
          %v309 = vadd.f32 %v307, %v308
          %v310 = vlog2.pop %v302
          %v311 = vmul.f32 %v310, 0.6931472
          %v312 = vlog2.pop %v309
          %v313 = vmul.f32 %v312, 0.6931472
          %v314 = vadd.f32 %v311, %v278
          %v315 = vadd.f32 %v313, %v285
          %v316 = vlaneseq
          %v317 = vshrl.u32 %v316, 7
          %v318 = vlaneseq
          %v319 = vshrl.u32 %v318, 7
          %v320 = vsub.s32 0, %v319
          %v321 = vrot.slane %v259, %v320
          %v322 = vlaneseq
          %v323 = vshrl.u32 %v322, 7
          %v324 = vsub.s32 1, %v323
          %v325 = vrot.slane %v259, %v324
          %vm326 = vcmp.eq.s32.totalorder %v317, %v321
          %vm327 = vcmp.eq.s32.totalorder %v317, %v325
          %v328 = vsel %vm326, %v258, 0.0
          %v329 = vsel %vm327, %v269, 0.0
          %v330 = vsel %vm271, %v328, 0.0
          %v331 = vrot.slane %v330, 4
          %v332 = vadd.f32 %v330, %v331
          %v333 = vrot.slane %v332, 2
          %v334 = vadd.f32 %v332, %v333
          %v335 = vrot.slane %v334, 1
          %v336 = vadd.f32 %v334, %v335
          %v337 = vsel %vm271, %v329, 0.0
          %v338 = vrot.slane %v337, 4
          %v339 = vadd.f32 %v337, %v338
          %v340 = vrot.slane %v339, 2
          %v341 = vadd.f32 %v339, %v340
          %v342 = vrot.slane %v341, 1
          %v343 = vadd.f32 %v341, %v342
          %v344 = vsub.f32 %v314, %v336
          %v345 = vsub.f32 %v315, %v343
          %v348 = vcombine.low %v344, %v345
          %v350 = vunpack.c.l.s4 1966171168
          %v351 = vunpack.c.0.s8 %v350
          %v352 = vlaneseq
          %v353 = vshrl.u32 %v352, 7
          %v354 = vsub.s32 %v351, %v353
          %v355 = vrot.slane %v348, %v354
          %v357 = vunpack.c.l.s4 1966171168
          %v358 = vunpack.c.0.s8 %v357
          %v359 = vlaneseq
          %v360 = vshrl.u32 %v359, 7
          %v361 = vsub.s32 %v358, %v360
          %v362 = vrot.slane %v355, %v361
          %v364 = vsel %vm267, %v362, 0.0
          %v365 = vld [vmem:[%s244] ss:$2 sm:$0x3]
          %v366 = vadd.f32 %v365, %v364
          %v367 = vlaneseq
          %vm368 = vcmp.ge.s32.totalorder %v367, 0
          %vm369 = vcmp.lt.s32.totalorder %v367, 256
          %vm370 = vmand %vm368, %vm369
          %371 = vst.msk [vmem:[%s244] ss:$2 sm:$0x3] %vm370, %v366
          %s372 = scalar_lea.vmem %s244, 1 [#allocation7]
          %v373 = vld [vmem:[%s372] ss:$2 sm:$0x3]
          %v374 = vsel %vm267, 1, 0
          %v375 = vcvt.s32.f32 %v374
          %v376 = vadd.f32 %v373, %v375
          %377 = vst.msk [vmem:[%s372] ss:$2 sm:$0x3] %vm370, %v376
        $region44: #{tpu_custom_call.1} parent=27 // pred_fallthru
          _
        %p378 = scmp.gt.s32.totalorder %s262, 256
        // Predicated region
        $region45: #{tpu_custom_call.1} parent=27 // pred_check
          %p379 = pneg %p378
        $region46: #{tpu_custom_call.1} parent=27 // pred_check_branch
          %381 = sbr.rel (%p379) target = $region48
        $region47: #{tpu_custom_call.1} parent=27 // pred_region
          %v382 = vlaneseq
          %v383 = vand.u32 %v382, 127
          %v384 = vadd.s32 %v383, 128
          %s385 = smul.u32 %s260, 256
          %v386 = vstv %s385
          %v387 = vadd.s32 %v386, %v383
          %v388 = vadd.s32 %v386, %v384
          %vm389 = vcmp.lt.s32.totalorder %v387, 256
          %vm390 = vcmp.lt.s32.totalorder %v388, 256
          %vm391 = vcmp.ne.s32.totalorder %v259, 255
          %v392 = vsel %vm389, 1, 0
          %v393 = vsel %vm390, 1, 0
          %v394 = vcombine.low %v392, %v393
          %v396 = vunpack.c.l.s4 1966171168
          %v397 = vunpack.c.0.s8 %v396
          %v398 = vlaneseq
          %v399 = vshrl.u32 %v398, 7
          %v400 = vsub.s32 %v397, %v399
          %v401 = vrot.slane %v394, %v400
          %v403 = vunpack.c.l.s4 1966171168
          %v404 = vunpack.c.0.s8 %v403
          %v405 = vlaneseq
          %v406 = vshrl.u32 %v405, 7
          %v407 = vsub.s32 %v404, %v406
          %v408 = vrot.slane %v401, %v407
          %vm409 = vcmp.ne.s32.totalorder %v408, 0
          %vm410 = vmand %vm391, %vm409
          %v412 = vcombine.high %v258, %v258
          %vm414 = vcmask 1043456
          %v415 = vsel %vm414, %v258, -inf
          %v416 = vrot.slane %v415, 4
          %v417 = vmax.f32 %v415, %v416
          %v418 = vrot.slane %v417, 2
          %v419 = vmax.f32 %v417, %v418
          %v420 = vrot.slane %v419, 1
          %v421 = vmax.f32 %v419, %v420
          %v422 = vsel %vm414, %v412, -inf
          %v423 = vrot.slane %v422, 4
          %v424 = vmax.f32 %v422, %v423
          %v425 = vrot.slane %v424, 2
          %v426 = vmax.f32 %v424, %v425
          %v427 = vrot.slane %v426, 1
          %v428 = vmax.f32 %v426, %v427
          %v431 = vcombine.low %v421, %v428
          %v433 = vsub.f32 %v258, %v431
          %v434 = vmul.f32 %v433, 1.442695
          %v435 = vpow.pop %v434
          %v437 = vcombine.high %v435, %v435
          %v439 = vsel %vm414, %v435, 0.0
          %v440 = vrot.slane %v439, 4
          %v441 = vadd.f32 %v439, %v440
          %v442 = vrot.slane %v441, 2
          %v443 = vadd.f32 %v441, %v442
          %v444 = vrot.slane %v443, 1
          %v445 = vadd.f32 %v443, %v444
          %v446 = vsel %vm414, %v437, 0.0
          %v447 = vrot.slane %v446, 4
          %v448 = vadd.f32 %v446, %v447
          %v449 = vrot.slane %v448, 2
          %v450 = vadd.f32 %v448, %v449
          %v451 = vrot.slane %v450, 1
          %v452 = vadd.f32 %v450, %v451
          %v453 = vlog2.pop %v445
          %v454 = vmul.f32 %v453, 0.6931472
          %v455 = vlog2.pop %v452
          %v456 = vmul.f32 %v455, 0.6931472
          %v457 = vadd.f32 %v454, %v421
          %v458 = vadd.f32 %v456, %v428
          %v459 = vlaneseq
          %v460 = vshrl.u32 %v459, 7
          %v461 = vlaneseq
          %v462 = vshrl.u32 %v461, 7
          %v463 = vsub.s32 0, %v462
          %v464 = vrot.slane %v259, %v463
          %v465 = vlaneseq
          %v466 = vshrl.u32 %v465, 7
          %v467 = vsub.s32 1, %v466
          %v468 = vrot.slane %v259, %v467
          %vm469 = vcmp.eq.s32.totalorder %v460, %v464
          %vm470 = vcmp.eq.s32.totalorder %v460, %v468
          %v471 = vsel %vm469, %v258, 0.0
          %v472 = vsel %vm470, %v412, 0.0
          %v473 = vsel %vm414, %v471, 0.0
          %v474 = vrot.slane %v473, 4
          %v475 = vadd.f32 %v473, %v474
          %v476 = vrot.slane %v475, 2
          %v477 = vadd.f32 %v475, %v476
          %v478 = vrot.slane %v477, 1
          %v479 = vadd.f32 %v477, %v478
          %v480 = vsel %vm414, %v472, 0.0
          %v481 = vrot.slane %v480, 4
          %v482 = vadd.f32 %v480, %v481
          %v483 = vrot.slane %v482, 2
          %v484 = vadd.f32 %v482, %v483
          %v485 = vrot.slane %v484, 1
          %v486 = vadd.f32 %v484, %v485
          %v487 = vsub.f32 %v457, %v479
          %v488 = vsub.f32 %v458, %v486
          %v491 = vcombine.low %v487, %v488
          %v493 = vunpack.c.l.s4 1966171168
          %v494 = vunpack.c.0.s8 %v493
          %v495 = vlaneseq
          %v496 = vshrl.u32 %v495, 7
          %v497 = vsub.s32 %v494, %v496
          %v498 = vrot.slane %v491, %v497
          %v500 = vunpack.c.l.s4 1966171168
          %v501 = vunpack.c.0.s8 %v500
          %v502 = vlaneseq
          %v503 = vshrl.u32 %v502, 7
          %v504 = vsub.s32 %v501, %v503
          %v505 = vrot.slane %v498, %v504
          %v507 = vsel %vm410, %v505, 0.0
          %v508 = vld [vmem:[%s244] ss:$2 sm:$0x3]
          %v509 = vadd.f32 %v508, %v507
          %v510 = vlaneseq
          %vm511 = vcmp.ge.s32.totalorder %v510, 0
          %vm512 = vcmp.lt.s32.totalorder %v510, 256
          %vm513 = vmand %vm511, %vm512
          %514 = vst.msk [vmem:[%s244] ss:$2 sm:$0x3] %vm513, %v509
          %s515 = scalar_lea.vmem %s244, 1 [#allocation7]
          %v516 = vld [vmem:[%s515] ss:$2 sm:$0x3]
          %v517 = vsel %vm410, 1, 0
          %v518 = vcvt.s32.f32 %v517
          %v519 = vadd.f32 %v516, %v518
          %520 = vst.msk [vmem:[%s515] ss:$2 sm:$0x3] %vm513, %v519
        $region48: #{tpu_custom_call.1} parent=27 // pred_fallthru
          _
        %s521 = sand.u32 %s119, 1
        %s522 = scalar_lea.sflag [#allocation4], %s521
        %s523 = sand.u32 %s119, 1
        %s524 = smul.addr %s523, 4
        %s525 = scalar_lea.vmem [#allocation7], %s524
        // Predicated region
        $region49: #{tpu_custom_call.1} parent=27 // pred_check
          %p526 = pneg %p129
        $region50: #{tpu_custom_call.1} parent=27 // pred_check_branch
          %528 = sbr.rel (%p526) target = $region52
        $region51: #{tpu_custom_call.1} parent=27 // pred_region
          %s530 = ssub.s32 64, 64
          %531 = vsyncadd %s522, %s530
          %s532 = smul.addr %s28, 2
          %s533 = smul.addr %s27, 4
          %s534 = sadd.s32 %s532, %s533
          %s535 = smul.addr %s534, 32
          %s536 = scalar_lea.hbm %s2, %s535
          %s538 = sshll.u32 %s525, 4
          %s539 = int_to_ptr.vmem [resolvable:$true] %s538
          %541 = dma.vmem_to_hbm [thread:$0]  %s539, 64, %s536, %s522
        $region52: #{tpu_custom_call.1} parent=27 // pred_fallthru
          _
      $region28: #{tpu_custom_call.1} parent=5 // pred_fallthru
        _
      %p542 = scmp.le.s32.totalorder 2, %s17
      // Predicated region
      $region53: #{tpu_custom_call.1} parent=5 // pred_check
        %p543 = pneg %p542
      $region54: #{tpu_custom_call.1} parent=5 // pred_check_branch
        %545 = sbr.rel (%p543) target = $region56
      $region55: #{tpu_custom_call.1} parent=5 // pred_region
        %s546 = ssub.s32 %s17, 2
        // Predicated region
        $region57: #{tpu_custom_call.1} parent=55 // pred_check
          %p547 = pneg %p135
        $region58: #{tpu_custom_call.1} parent=55 // pred_check_branch
          %549 = sbr.rel (%p547) target = $region60
        $region59: #{tpu_custom_call.1} parent=55 // pred_region
          %s550 = sand.u32 %s120, 1
          %s551 = scalar_lea.sflag [#allocation4], %s550
          %s552 = sand.u32 %s120, 1
          %s553 = smul.addr %s552, 4
          %s554 = scalar_lea.vmem [#allocation7], %s553
          %555 = dma.done %s551, 64
        $region60: #{tpu_custom_call.1} parent=55 // pred_fallthru
          _
      $region56: #{tpu_custom_call.1} parent=5 // pred_fallthru
        _
    $region6: #{tpu_custom_call.1} parent=1 // loop_footer
      %s21 = sadd.s32 1, %s17
    $region7: #{tpu_custom_call.1} parent=1 // loop_footer_branch
      %16 = sbr.rel target = $region3
    $region8: #{tpu_custom_call.1} parent=1 // loop_exit
      _
    %556 = vsyncpa [#allocation3], 1
    %s557 = scalar_lea.sflag [#allocation3], 1
    %558 = vsyncpa %s557, 1
    %559 = vsyncpa [#allocation6], 1
    %s560 = scalar_lea.sflag [#allocation6], 1
    %561 = vsyncpa %s560, 1
    %562 = vsyncpa [#allocation4], 1
    %s563 = scalar_lea.sflag [#allocation4], 1
    %564 = vsyncpa %s563, 1

</llo_original>
